<compile_context>
chip_gen: v7x
topology: tpu7x:2x2x1
jax: 0.10.0
libtpu: 0.0.40
codegen_flags: <defaults>
</compile_context>

<pallas_src>
import jax
import jax.numpy as jnp
from jax.experimental import pallas as pl
from jax.experimental.pallas import tpu as pltpu

LN_EPS = 1e-5


# ---------------------------------------------------------------------------
# Fused kernel: LN(x), LN(ctx), ctx-mean, both projections, bias — one pass.
# ---------------------------------------------------------------------------
def prenorm_fused_kernel(x_ref, ctx_ref, gx_ref, bx_ref, gc_ref, bc_ref,
                         wx_ref, wc_ref, bias_ref, o_ref):
    BN, D = x_ref.shape            # x flattened to (B*N, D)
    B, M, C = ctx_ref.shape
    N = BN // B                    # static Python ints

    # ---- LayerNorm(x) over feature axis, one-pass stats (f32 on the VPU) ----
    x = x_ref[...].astype(jnp.float32)                         # (BN, D)
    mean_x = jnp.sum(x, axis=-1, keepdims=True) * (1.0 / D)
    msq_x = jnp.sum(x * x, axis=-1, keepdims=True) * (1.0 / D)
    var_x = msq_x - mean_x * mean_x
    xn = (x - mean_x) * jax.lax.rsqrt(var_x + LN_EPS)
    xn = xn * gx_ref[...] + bx_ref[...]                        # gamma/beta (1, D)

    # ---- LayerNorm(context), one-pass stats ----
    c = ctx_ref[...].astype(jnp.float32)                       # (B, M, C)
    mean_c = jnp.sum(c, axis=-1, keepdims=True) * (1.0 / C)
    msq_c = jnp.sum(c * c, axis=-1, keepdims=True) * (1.0 / C)
    var_c = msq_c - mean_c * mean_c
    cn = (c - mean_c) * jax.lax.rsqrt(var_c + LN_EPS)
    cn = cn * gc_ref[...] + bc_ref[...]                        # gamma/beta (1, C)

    # ---- per-batch mean over the context sequence ----
    ctx_mean = jnp.mean(cn, axis=1)                            # (B, C)

    # ---- ctx_mean @ Wc on the VPU/XLU (too few rows for a useful MXU pass) ----
    wc = wc_ref[...].astype(jnp.float32)                       # (C, D)
    ctx_proj = jnp.sum(ctx_mean[:, :, None] * wc[None, :, :], axis=1)   # (B, D)

    # fold the context projection and bias into one additive term, replicated
    # to the B*N rows (row r belongs to batch r // N)
    add = ctx_proj + bias_ref[...]                             # (B, D)
    add_rows = jnp.broadcast_to(add[:, None, :], (B, N, D)).reshape(BN, D)

    # ---- the only MXU matmul: (B*N, D) @ (D, D), bf16 operands, f32 acc ----
    y = jnp.dot(xn.astype(jnp.bfloat16),
                wx_ref[...].astype(jnp.bfloat16),
                preferred_element_type=jnp.float32)            # (BN, D)

    o_ref[...] = (y + add_rows).astype(o_ref.dtype)


# ---------------------------------------------------------------------------
# Wrapper: one pallas_call for the whole PreNorm forward.
# ---------------------------------------------------------------------------
def prenorm_forward(x, context, params):
    """x: (B, N, D); context: (B, M, C)."""
    B, N, D = x.shape
    Bc, M, C = context.shape
    assert Bc == B

    x2 = x.reshape(B * N, D)                 # free, contiguous reshape in XLA
    gx = params["ln_x_gamma"].reshape(1, D)
    bx = params["ln_x_beta"].reshape(1, D)
    gc = params["ln_c_gamma"].reshape(1, C)
    bc = params["ln_c_beta"].reshape(1, C)
    bias = params["bias"].reshape(1, D)

    out2 = pl.pallas_call(
        prenorm_fused_kernel,
        out_shape=jax.ShapeDtypeStruct((B * N, D), x.dtype),
        grid=(1,),
        in_specs=[
            pl.BlockSpec((B * N, D), lambda i: (0, 0)),     # x (flattened)
            pl.BlockSpec((B, M, C), lambda i: (0, 0, 0)),   # context
            pl.BlockSpec((1, D), lambda i: (0, 0)),         # ln_x gamma
            pl.BlockSpec((1, D), lambda i: (0, 0)),         # ln_x beta
            pl.BlockSpec((1, C), lambda i: (0, 0)),         # ln_c gamma
            pl.BlockSpec((1, C), lambda i: (0, 0)),         # ln_c beta
            pl.BlockSpec((D, D), lambda i: (0, 0)),         # Wx
            pl.BlockSpec((C, D), lambda i: (0, 0)),         # Wc
            pl.BlockSpec((1, D), lambda i: (0, 0)),         # bias
        ],
        out_specs=pl.BlockSpec((B * N, D), lambda i: (0, 0)),
        compiler_params=pltpu.CompilerParams(
            dimension_semantics=("arbitrary",),
            vmem_limit_bytes=32 * 1024 * 1024,
        ),
    )(x2, context, gx, bx, gc, bc, params["Wx"], params["Wc"], bias)

    return out2.reshape(B, N, D)


# ---------------------------------------------------------------------------
# Pure-JAX references.
# ---------------------------------------------------------------------------
def prenorm_reference(x, context, params, mxu_dtype=None):
    def ln(a, g, b):
        m = a.mean(-1, keepdims=True)
        v = ((a - m) ** 2).mean(-1, keepdims=True)
        return (a - m) / jnp.sqrt(v + LN_EPS) * g + b

    xn = ln(x, params["ln_x_gamma"], params["ln_x_beta"])
    cn = ln(context, params["ln_c_gamma"], params["ln_c_beta"])

    Wx = params["Wx"]
    xn_mm = xn
    if mxu_dtype is not None:          # mimic the kernel's bf16-operand MXU dot
        xn_mm = xn.astype(mxu_dtype)
        Wx = Wx.astype(mxu_dtype)
    proj = jnp.einsum("bnd,de->bne", xn_mm, Wx,
                      preferred_element_type=jnp.float32)

    ctx_proj = cn.mean(1, keepdims=True) @ params["Wc"]
    return proj + ctx_proj + params["bias"]


if __name__ == "__main__":
    B, N, D = 2, 8, 32      # x: batch, seq, dim
    M, C = 16, 48           # context: seq, context_dim

    key = jax.random.PRNGKey(0)
    kx, kc, kwx, kwc, kb = jax.random.split(key, 5)

    x = jax.random.normal(kx, (B, N, D), dtype=jnp.float32)
    context = jax.random.normal(kc, (B, M, C), dtype=jnp.float32)

    params = {
        # nn.LayerNorm default init: weight = 1, bias = 0
        "ln_x_gamma": jnp.ones((D,), jnp.float32),
        "ln_x_beta": jnp.zeros((D,), jnp.float32),
        "ln_c_gamma": jnp.ones((C,), jnp.float32),
        "ln_c_beta": jnp.zeros((C,), jnp.float32),
        # deterministic weights for the injected `fn`
        "Wx": jax.random.normal(kwx, (D, D), dtype=jnp.float32) * 0.1,
        "Wc": jax.random.normal(kwc, (C, D), dtype=jnp.float32) * 0.1,
        "bias": jax.random.normal(kb, (D,), dtype=jnp.float32) * 0.1,
    }

    out = jax.block_until_ready(prenorm_forward(x, context, params))
    assert out.shape == (B, N, D)

    # Tight check vs. a reference using the same bf16-operand / f32-acc matmul.
    ref_bf16 = prenorm_reference(x, context, params, mxu_dtype=jnp.bfloat16)
    assert jnp.allclose(out, ref_bf16, atol=5e-3, rtol=5e-3), "mismatch vs bf16-matched reference"

    # Looser check vs. the full-f32 reference (bounds bf16 MXU rounding).
    ref_f32 = prenorm_reference(x, context, params)
    assert jnp.allclose(out, ref_f32, atol=2e-2, rtol=2e-2), "mismatch vs f32 reference"

    print("KERNEL_OK")
</pallas_src>

<mosaic_0001>
module attributes {stable_mosaic.version = 11 : i64} {
  func.func @prenorm_fused_kernel(%arg0: i32, %arg1: memref<16x32xf32, #tpu.memory_space<vmem>>, %arg2: memref<2x16x48xf32, #tpu.memory_space<vmem>>, %arg3: memref<1x32xf32, #tpu.memory_space<vmem>>, %arg4: memref<1x32xf32, #tpu.memory_space<vmem>>, %arg5: memref<1x48xf32, #tpu.memory_space<vmem>>, %arg6: memref<1x48xf32, #tpu.memory_space<vmem>>, %arg7: memref<32x32xf32, #tpu.memory_space<vmem>>, %arg8: memref<48x32xf32, #tpu.memory_space<vmem>>, %arg9: memref<1x32xf32, #tpu.memory_space<vmem>>, %arg10: memref<16x32xf32, #tpu.memory_space<vmem>>) attributes {dimension_semantics = [#tpu.dimension_semantics<arbitrary>], iteration_bounds = array<i64: 1>, scalar_prefetch = 0 : i64, scratch_operands = 0 : i64, tpu.core_type = #tpu.core_type<tc>, window_params = [{pipeline_mode = #tpu.pipeline_mode<synchronous>, transform_indices = @transform_0, window_bounds = array<i64: 16, 32>}, {pipeline_mode = #tpu.pipeline_mode<synchronous>, transform_indices = @transform_1, window_bounds = array<i64: 2, 16, 48>}, {pipeline_mode = #tpu.pipeline_mode<synchronous>, transform_indices = @transform_2, window_bounds = array<i64: 1, 32>}, {pipeline_mode = #tpu.pipeline_mode<synchronous>, transform_indices = @transform_3, window_bounds = array<i64: 1, 32>}, {pipeline_mode = #tpu.pipeline_mode<synchronous>, transform_indices = @transform_4, window_bounds = array<i64: 1, 48>}, {pipeline_mode = #tpu.pipeline_mode<synchronous>, transform_indices = @transform_5, window_bounds = array<i64: 1, 48>}, {pipeline_mode = #tpu.pipeline_mode<synchronous>, transform_indices = @transform_6, window_bounds = array<i64: 32, 32>}, {pipeline_mode = #tpu.pipeline_mode<synchronous>, transform_indices = @transform_7, window_bounds = array<i64: 48, 32>}, {pipeline_mode = #tpu.pipeline_mode<synchronous>, transform_indices = @transform_8, window_bounds = array<i64: 1, 32>}, {pipeline_mode = #tpu.pipeline_mode<synchronous>, transform_indices = @transform_9, window_bounds = array<i64: 16, 32>}]} {
    %c0 = arith.constant 0 : index
    %c0_0 = arith.constant 0 : index
    %0 = vector.load %arg1[%c0, %c0_0] : memref<16x32xf32, #tpu.memory_space<vmem>>, vector<16x32xf32>
    %cst = arith.constant dense<0.000000e+00> : vector<16xf32>
    %1 = vector.multi_reduction <add>, %0, %cst [1] : vector<16x32xf32> to vector<16xf32>
    %2 = vector.shape_cast %1 : vector<16xf32> to vector<16x1xf32>
    %cst_1 = arith.constant 3.125000e-02 : f32
    %3 = vector.broadcast %cst_1 : f32 to vector<16x1xf32>
    %4 = arith.mulf %2, %3 : vector<16x1xf32>
    %5 = arith.mulf %0, %0 : vector<16x32xf32>
    %cst_2 = arith.constant dense<0.000000e+00> : vector<16xf32>
    %6 = vector.multi_reduction <add>, %5, %cst_2 [1] : vector<16x32xf32> to vector<16xf32>
    %7 = vector.shape_cast %6 : vector<16xf32> to vector<16x1xf32>
    %cst_3 = arith.constant 3.125000e-02 : f32
    %8 = vector.broadcast %cst_3 : f32 to vector<16x1xf32>
    %9 = arith.mulf %7, %8 : vector<16x1xf32>
    %10 = arith.mulf %4, %4 : vector<16x1xf32>
    %11 = arith.subf %9, %10 : vector<16x1xf32>
    %12 = vector.broadcast %4 : vector<16x1xf32> to vector<16x32xf32>
    %13 = arith.subf %0, %12 : vector<16x32xf32>
    %cst_4 = arith.constant 9.99999974E-6 : f32
    %14 = vector.broadcast %cst_4 : f32 to vector<16x1xf32>
    %15 = arith.addf %11, %14 : vector<16x1xf32>
    %16 = math.rsqrt %15 : vector<16x1xf32>
    %17 = vector.broadcast %16 : vector<16x1xf32> to vector<16x32xf32>
    %18 = arith.mulf %13, %17 : vector<16x32xf32>
    %c0_5 = arith.constant 0 : index
    %c0_6 = arith.constant 0 : index
    %19 = vector.load %arg3[%c0_5, %c0_6] : memref<1x32xf32, #tpu.memory_space<vmem>>, vector<1x32xf32>
    %20 = vector.broadcast %19 : vector<1x32xf32> to vector<16x32xf32>
    %21 = arith.mulf %18, %20 : vector<16x32xf32>
    %c0_7 = arith.constant 0 : index
    %c0_8 = arith.constant 0 : index
    %22 = vector.load %arg4[%c0_7, %c0_8] : memref<1x32xf32, #tpu.memory_space<vmem>>, vector<1x32xf32>
    %23 = vector.broadcast %22 : vector<1x32xf32> to vector<16x32xf32>
    %24 = arith.addf %21, %23 : vector<16x32xf32>
    %c0_9 = arith.constant 0 : index
    %c0_10 = arith.constant 0 : index
    %c0_11 = arith.constant 0 : index
    %25 = vector.load %arg2[%c0_9, %c0_10, %c0_11] : memref<2x16x48xf32, #tpu.memory_space<vmem>>, vector<2x16x48xf32>
    %cst_12 = arith.constant dense<0.000000e+00> : vector<2x16xf32>
    %26 = vector.multi_reduction <add>, %25, %cst_12 [2] : vector<2x16x48xf32> to vector<2x16xf32>
    %27 = vector.shape_cast %26 : vector<2x16xf32> to vector<2x16x1xf32>
    %cst_13 = arith.constant 0.020833334 : f32
    %28 = vector.broadcast %cst_13 : f32 to vector<2x16x1xf32>
    %29 = arith.mulf %27, %28 : vector<2x16x1xf32>
    %30 = arith.mulf %25, %25 : vector<2x16x48xf32>
    %cst_14 = arith.constant dense<0.000000e+00> : vector<2x16xf32>
    %31 = vector.multi_reduction <add>, %30, %cst_14 [2] : vector<2x16x48xf32> to vector<2x16xf32>
    %32 = vector.shape_cast %31 : vector<2x16xf32> to vector<2x16x1xf32>
    %cst_15 = arith.constant 0.020833334 : f32
    %33 = vector.broadcast %cst_15 : f32 to vector<2x16x1xf32>
    %34 = arith.mulf %32, %33 : vector<2x16x1xf32>
    %35 = arith.mulf %29, %29 : vector<2x16x1xf32>
    %36 = arith.subf %34, %35 : vector<2x16x1xf32>
    %37 = vector.broadcast %29 : vector<2x16x1xf32> to vector<2x16x48xf32>
    %38 = arith.subf %25, %37 : vector<2x16x48xf32>
    %cst_16 = arith.constant 9.99999974E-6 : f32
    %39 = vector.broadcast %cst_16 : f32 to vector<2x16x1xf32>
    %40 = arith.addf %36, %39 : vector<2x16x1xf32>
    %41 = math.rsqrt %40 : vector<2x16x1xf32>
    %42 = vector.broadcast %41 : vector<2x16x1xf32> to vector<2x16x48xf32>
    %43 = arith.mulf %38, %42 : vector<2x16x48xf32>
    %c0_17 = arith.constant 0 : index
    %c0_18 = arith.constant 0 : index
    %44 = vector.load %arg5[%c0_17, %c0_18] : memref<1x48xf32, #tpu.memory_space<vmem>>, vector<1x48xf32>
    %45 = vector.shape_cast %44 : vector<1x48xf32> to vector<1x1x48xf32>
    %46 = vector.broadcast %45 : vector<1x1x48xf32> to vector<2x16x48xf32>
    %47 = arith.mulf %43, %46 : vector<2x16x48xf32>
    %c0_19 = arith.constant 0 : index
    %c0_20 = arith.constant 0 : index
    %48 = vector.load %arg6[%c0_19, %c0_20] : memref<1x48xf32, #tpu.memory_space<vmem>>, vector<1x48xf32>
    %49 = vector.shape_cast %48 : vector<1x48xf32> to vector<1x1x48xf32>
    %50 = vector.broadcast %49 : vector<1x1x48xf32> to vector<2x16x48xf32>
    %51 = arith.addf %47, %50 : vector<2x16x48xf32>
    %cst_21 = arith.constant dense<0.000000e+00> : vector<2x48xf32>
    %52 = vector.multi_reduction <add>, %51, %cst_21 [1] : vector<2x16x48xf32> to vector<2x48xf32>
    %cst_22 = arith.constant 1.600000e+01 : f32
    %53 = vector.broadcast %cst_22 : f32 to vector<2x48xf32>
    %54 = arith.divf %52, %53 : vector<2x48xf32>
    %c0_23 = arith.constant 0 : index
    %c0_24 = arith.constant 0 : index
    %55 = vector.load %arg8[%c0_23, %c0_24] : memref<48x32xf32, #tpu.memory_space<vmem>>, vector<48x32xf32>
    %56 = vector.shape_cast %54 : vector<2x48xf32> to vector<2x48x1xf32>
    %57 = vector.shape_cast %55 : vector<48x32xf32> to vector<1x48x32xf32>
    %58 = vector.broadcast %56 : vector<2x48x1xf32> to vector<2x48x32xf32>
    %59 = vector.broadcast %57 : vector<1x48x32xf32> to vector<2x48x32xf32>
    %60 = arith.mulf %58, %59 : vector<2x48x32xf32>
    %cst_25 = arith.constant dense<0.000000e+00> : vector<2x32xf32>
    %61 = vector.multi_reduction <add>, %60, %cst_25 [1] : vector<2x48x32xf32> to vector<2x32xf32>
    %c0_26 = arith.constant 0 : index
    %c0_27 = arith.constant 0 : index
    %62 = vector.load %arg9[%c0_26, %c0_27] : memref<1x32xf32, #tpu.memory_space<vmem>>, vector<1x32xf32>
    %63 = vector.broadcast %62 : vector<1x32xf32> to vector<2x32xf32>
    %64 = arith.addf %61, %63 : vector<2x32xf32>
    %65 = vector.shape_cast %64 : vector<2x32xf32> to vector<2x1x32xf32>
    %66 = vector.shape_cast %65 : vector<2x1x32xf32> to vector<2x1x32xf32>
    %67 = vector.broadcast %66 : vector<2x1x32xf32> to vector<2x8x32xf32>
    %68 = vector.shape_cast %67 : vector<2x8x32xf32> to vector<16x32xf32>
    %69 = arith.truncf %24 : vector<16x32xf32> to vector<16x32xbf16>
    %c0_28 = arith.constant 0 : index
    %c0_29 = arith.constant 0 : index
    %70 = vector.load %arg7[%c0_28, %c0_29] : memref<32x32xf32, #tpu.memory_space<vmem>>, vector<32x32xf32>
    %71 = arith.truncf %70 : vector<32x32xf32> to vector<32x32xbf16>
    %cst_30 = arith.constant dense<0.000000e+00> : vector<16x32xf32>
    %72 = tpu.matmul %69, %71, %cst_30 {dimension_numbers = #tpu.dot_dimension_numbers<[1], [0], [0], [1], [0, 0, 1, 1], [], []>} : vector<16x32xbf16>, vector<32x32xbf16>, vector<16x32xf32> -> vector<16x32xf32>
    %73 = arith.addf %72, %68 : vector<16x32xf32>
    %c0_31 = arith.constant 0 : index
    %c0_32 = arith.constant 0 : index
    %74 = vector.load %arg10[%c0_31, %c0_32] : memref<16x32xf32, #tpu.memory_space<vmem>>, vector<16x32xf32>
    tpu.vector_store %arg10[%c0_31, %c0_32], %73 {strides = array<i32>} : memref<16x32xf32, #tpu.memory_space<vmem>>, vector<16x32xf32>,
    return
  }
  func.func @transform_0(%arg0: i32) -> (i32, i32) {
    %c0_i32 = arith.constant 0 : i32
    %c0_i32_0 = arith.constant 0 : i32
    %c0_i32_1 = arith.constant 0 : i32
    return %c0_i32, %c0_i32_0 : i32, i32
  }
  func.func @transform_1(%arg0: i32) -> (i32, i32, i32) {
    %c0_i32 = arith.constant 0 : i32
    %c0_i32_0 = arith.constant 0 : i32
    %c0_i32_1 = arith.constant 0 : i32
    %c0_i32_2 = arith.constant 0 : i32
    return %c0_i32, %c0_i32_0, %c0_i32_1 : i32, i32, i32
  }
  func.func @transform_2(%arg0: i32) -> (i32, i32) {
    %c0_i32 = arith.constant 0 : i32
    %c0_i32_0 = arith.constant 0 : i32
    %c0_i32_1 = arith.constant 0 : i32
    return %c0_i32, %c0_i32_0 : i32, i32
  }
  func.func @transform_3(%arg0: i32) -> (i32, i32) {
    %c0_i32 = arith.constant 0 : i32
    %c0_i32_0 = arith.constant 0 : i32
    %c0_i32_1 = arith.constant 0 : i32
    return %c0_i32, %c0_i32_0 : i32, i32
  }
  func.func @transform_4(%arg0: i32) -> (i32, i32) {
    %c0_i32 = arith.constant 0 : i32
    %c0_i32_0 = arith.constant 0 : i32
    %c0_i32_1 = arith.constant 0 : i32
    return %c0_i32, %c0_i32_0 : i32, i32
  }
  func.func @transform_5(%arg0: i32) -> (i32, i32) {
    %c0_i32 = arith.constant 0 : i32
    %c0_i32_0 = arith.constant 0 : i32
    %c0_i32_1 = arith.constant 0 : i32
    return %c0_i32, %c0_i32_0 : i32, i32
  }
  func.func @transform_6(%arg0: i32) -> (i32, i32) {
    %c0_i32 = arith.constant 0 : i32
    %c0_i32_0 = arith.constant 0 : i32
    %c0_i32_1 = arith.constant 0 : i32
    return %c0_i32, %c0_i32_0 : i32, i32
  }
  func.func @transform_7(%arg0: i32) -> (i32, i32) {
    %c0_i32 = arith.constant 0 : i32
    %c0_i32_0 = arith.constant 0 : i32
    %c0_i32_1 = arith.constant 0 : i32
    return %c0_i32, %c0_i32_0 : i32, i32
  }
  func.func @transform_8(%arg0: i32) -> (i32, i32) {
    %c0_i32 = arith.constant 0 : i32
    %c0_i32_0 = arith.constant 0 : i32
    %c0_i32_1 = arith.constant 0 : i32
    return %c0_i32, %c0_i32_0 : i32, i32
  }
  func.func @transform_9(%arg0: i32) -> (i32, i32) {
    %c0_i32 = arith.constant 0 : i32
    %c0_i32_0 = arith.constant 0 : i32
    %c0_i32_1 = arith.constant 0 : i32
    return %c0_i32, %c0_i32_0 : i32, i32
  }
}

</mosaic_0001>

<llo_original>
// kernel: tpu_custom_call.1
$region0: #{tpu_custom_call.1}
  #allocation0 [shape = 'u32[]', space=smem, size = 0x4, offset = 0x4, fixed_abs, tag = 'smem constant byte address 0x4 - core index']
  #allocation1 [shape = 'u32[144,128]{1,0:T(1,128)}', space=vmem, size = 0x12000, scoped, tag = 'internal scratch']
  %s0 = inlined_call_operand.vmem [shape: f32[16,32], index: 0, kind: input, shape index: {}]
  %s1 = inlined_call_operand.vmem [shape: f32[2,16,48], index: 1, kind: input, shape index: {}]
  %s2 = inlined_call_operand.vmem [shape: f32[1,32], index: 2, kind: input, shape index: {}]
  %s3 = inlined_call_operand.vmem [shape: f32[1,32], index: 3, kind: input, shape index: {}]
  %s4 = inlined_call_operand.vmem [shape: f32[1,48], index: 4, kind: input, shape index: {}]
  %s5 = inlined_call_operand.vmem [shape: f32[1,48], index: 5, kind: input, shape index: {}]
  %s6 = inlined_call_operand.vmem [shape: f32[32,32], index: 6, kind: input, shape index: {}]
  %s7 = inlined_call_operand.vmem [shape: f32[48,32], index: 7, kind: input, shape index: {}]
  %s8 = inlined_call_operand.vmem [shape: f32[1,32], index: 8, kind: input, shape index: {}]
  %s9 = inlined_call_operand.hbm [shape: f32[16,32], index: 9, kind: output, shape index: {}]
  %s10 = sld [smem:[#allocation0]]
  $region46: #{tpu_custom_call.1} parent=0
    _
  %s12 = ssub.s32 1, %s10
  %s13 = scalar_select 0, %s12, %s10
  $region1: #{tpu_custom_call.1} parent=0
    #allocation2 [shape = 'u8[8192]{0}', space=vmem, size = 0x2000, scoped, tag = 'output window, operand 0, single buffered']
    #allocation3 [shape = 's32[1]{0}', space=sflag, size = 0x4, scoped, tag = 'scoped memory for tpu_custom_call.1']
    %14 = vsyncpa [#allocation3], 0
    // Predicated region
    $region2: #{tpu_custom_call.1} parent=1 // pred_check
      _
    $region3: #{tpu_custom_call.1} parent=1 // pred_check_branch
      %16 = sbr.rel (0) target = $region5
    $region4: #{tpu_custom_call.1} parent=1 // pred_region
      _
    $region5: #{tpu_custom_call.1} parent=1 // pred_fallthru
      _
    // Predicated region
    $region6: #{tpu_custom_call.1} parent=1 // pred_check
      _
    $region7: #{tpu_custom_call.1} parent=1 // pred_check_branch
      %18 = sbr.rel (0) target = $region9
    $region8: #{tpu_custom_call.1} parent=1 // pred_region
      _
    $region9: #{tpu_custom_call.1} parent=1 // pred_fallthru
      _
    // Predicated region
    $region10: #{tpu_custom_call.1} parent=1 // pred_check
      _
    $region11: #{tpu_custom_call.1} parent=1 // pred_check_branch
      %20 = sbr.rel (0) target = $region13
    $region12: #{tpu_custom_call.1} parent=1 // pred_region
      _
    $region13: #{tpu_custom_call.1} parent=1 // pred_fallthru
      _
    // Predicated region
    $region14: #{tpu_custom_call.1} parent=1 // pred_check
      _
    $region15: #{tpu_custom_call.1} parent=1 // pred_check_branch
      %22 = sbr.rel (0) target = $region17
    $region16: #{tpu_custom_call.1} parent=1 // pred_region
      _
    $region17: #{tpu_custom_call.1} parent=1 // pred_fallthru
      _
    // Predicated region
    $region18: #{tpu_custom_call.1} parent=1 // pred_check
      _
    $region19: #{tpu_custom_call.1} parent=1 // pred_check_branch
      %24 = sbr.rel (0) target = $region21
    $region20: #{tpu_custom_call.1} parent=1 // pred_region
      _
    $region21: #{tpu_custom_call.1} parent=1 // pred_fallthru
      _
    // Predicated region
    $region22: #{tpu_custom_call.1} parent=1 // pred_check
      _
    $region23: #{tpu_custom_call.1} parent=1 // pred_check_branch
      %26 = sbr.rel (0) target = $region25
    $region24: #{tpu_custom_call.1} parent=1 // pred_region
      _
    $region25: #{tpu_custom_call.1} parent=1 // pred_fallthru
      _
    // Predicated region
    $region26: #{tpu_custom_call.1} parent=1 // pred_check
      _
    $region27: #{tpu_custom_call.1} parent=1 // pred_check_branch
      %28 = sbr.rel (0) target = $region29
    $region28: #{tpu_custom_call.1} parent=1 // pred_region
      _
    $region29: #{tpu_custom_call.1} parent=1 // pred_fallthru
      _
    // Predicated region
    $region30: #{tpu_custom_call.1} parent=1 // pred_check
      _
    $region31: #{tpu_custom_call.1} parent=1 // pred_check_branch
      %30 = sbr.rel (0) target = $region33
    $region32: #{tpu_custom_call.1} parent=1 // pred_region
      _
    $region33: #{tpu_custom_call.1} parent=1 // pred_fallthru
      _
    // Predicated region
    $region34: #{tpu_custom_call.1} parent=1 // pred_check
      _
    $region35: #{tpu_custom_call.1} parent=1 // pred_check_branch
      %32 = sbr.rel (0) target = $region37
    $region36: #{tpu_custom_call.1} parent=1 // pred_region
      _
    $region37: #{tpu_custom_call.1} parent=1 // pred_fallthru
      _
    %v34 = vld [vmem:[%s0] sm:$0xff]
    %v35 = vld [vmem:[%s0 + $0x8] sm:$0xff]
    %vm36 = vcmask 261120
    %v37 = vsel %vm36, %v34, 0.0
    %38 = vadd.xlane.f32.xlu0 %v37
    %v39 = vpop.xlane.xlu0 %38
    %v40 = vsel %vm36, %v35, 0.0
    %41 = vadd.xlane.f32.xlu0 %v40
    %v42 = vpop.xlane.xlu0 %41
    %v43 = vmul.f32 %v39, 0.03125
    %v44 = vmul.f32 %v42, 0.03125
    %v45 = vmul.f32 %v34, %v34
    %v46 = vmul.f32 %v35, %v35
    %v47 = vsel %vm36, %v45, 0.0
    %48 = vadd.xlane.f32.xlu0 %v47
    %v49 = vpop.xlane.xlu0 %48
    %v50 = vsel %vm36, %v46, 0.0
    %51 = vadd.xlane.f32.xlu0 %v50
    %v52 = vpop.xlane.xlu0 %51
    %v53 = vmul.f32 %v49, 0.03125
    %v54 = vmul.f32 %v52, 0.03125
    %v55 = vmul.f32 %v43, %v43
    %v56 = vmul.f32 %v44, %v44
    %v57 = vsub.f32 %v53, %v55
    %v58 = vsub.f32 %v54, %v56
    %v59 = vsub.f32 %v34, %v43
    %v60 = vsub.f32 %v35, %v44
    %v61 = vadd.f32 %v57, 1e-05
    %v62 = vadd.f32 %v58, 1e-05
    %v63 = vrsqrt.pop %v61
    %v64 = vrsqrt.pop %v62
    %v65 = vmul.f32 %v59, %v63
    %v66 = vmul.f32 %v60, %v64
    %v67 = vld [vmem:[%s2] sm:$0x1]
    %v69 = vlaneseq
    %v70 = vshrl.u32 %v69, 7
    %v71 = vsub.s32 0, %v70
    %v72 = vrot.slane %v67, %v71
    %v74 = vmul.f32 %v65, %v72
    %v75 = vmul.f32 %v66, %v72
    %v76 = vld [vmem:[%s3] sm:$0x1]
    %v78 = vlaneseq
    %v79 = vshrl.u32 %v78, 7
    %v80 = vsub.s32 0, %v79
    %v81 = vrot.slane %v76, %v80
    %v83 = vadd.f32 %v74, %v81
    %v84 = vadd.f32 %v75, %v81
    %v85 = vld [vmem:[%s1] sm:$0xff]
    %v86 = vld [vmem:[%s1 + $0x8] sm:$0xff]
    %v87 = vld [vmem:[%s1 + $0x10] sm:$0xff]
    %v88 = vld [vmem:[%s1 + $0x18] sm:$0xff]
    %vm89 = vcmask 392192
    %v90 = vsel %vm89, %v85, 0.0
    %91 = vadd.xlane.f32.xlu0 %v90
    %v92 = vpop.xlane.xlu0 %91
    %v93 = vsel %vm89, %v86, 0.0
    %94 = vadd.xlane.f32.xlu0 %v93
    %v95 = vpop.xlane.xlu0 %94
    %v96 = vsel %vm89, %v87, 0.0
    %97 = vadd.xlane.f32.xlu0 %v96
    %v98 = vpop.xlane.xlu0 %97
    %v99 = vsel %vm89, %v88, 0.0
    %100 = vadd.xlane.f32.xlu0 %v99
    %v101 = vpop.xlane.xlu0 %100
    %v102 = vmul.f32 %v92, 0.020833334
    %v103 = vmul.f32 %v95, 0.020833334
    %v104 = vmul.f32 %v98, 0.020833334
    %v105 = vmul.f32 %v101, 0.020833334
    %v106 = vmul.f32 %v85, %v85
    %v107 = vmul.f32 %v86, %v86
    %v108 = vmul.f32 %v87, %v87
    %v109 = vmul.f32 %v88, %v88
    %v110 = vsel %vm89, %v106, 0.0
    %111 = vadd.xlane.f32.xlu0 %v110
    %v112 = vpop.xlane.xlu0 %111
    %v113 = vsel %vm89, %v107, 0.0
    %114 = vadd.xlane.f32.xlu0 %v113
    %v115 = vpop.xlane.xlu0 %114
    %v116 = vsel %vm89, %v108, 0.0
    %117 = vadd.xlane.f32.xlu0 %v116
    %v118 = vpop.xlane.xlu0 %117
    %v119 = vsel %vm89, %v109, 0.0
    %120 = vadd.xlane.f32.xlu0 %v119
    %v121 = vpop.xlane.xlu0 %120
    %v122 = vmul.f32 %v112, 0.020833334
    %v123 = vmul.f32 %v115, 0.020833334
    %v124 = vmul.f32 %v118, 0.020833334
    %v125 = vmul.f32 %v121, 0.020833334
    %v126 = vmul.f32 %v102, %v102
    %v127 = vmul.f32 %v103, %v103
    %v128 = vmul.f32 %v104, %v104
    %v129 = vmul.f32 %v105, %v105
    %v130 = vsub.f32 %v122, %v126
    %v131 = vsub.f32 %v123, %v127
    %v132 = vsub.f32 %v124, %v128
    %v133 = vsub.f32 %v125, %v129
    %v134 = vsub.f32 %v85, %v102
    %v135 = vsub.f32 %v86, %v103
    %v136 = vsub.f32 %v87, %v104
    %v137 = vsub.f32 %v88, %v105
    %v138 = vadd.f32 %v130, 1e-05
    %v139 = vadd.f32 %v131, 1e-05
    %v140 = vadd.f32 %v132, 1e-05
    %v141 = vadd.f32 %v133, 1e-05
    %v142 = vrsqrt.pop %v138
    %v143 = vrsqrt.pop %v139
    %v144 = vrsqrt.pop %v140
    %v145 = vrsqrt.pop %v141
    %v146 = vmul.f32 %v134, %v142
    %v147 = vmul.f32 %v135, %v143
    %v148 = vmul.f32 %v136, %v144
    %v149 = vmul.f32 %v137, %v145
    %v150 = vld [vmem:[%s4] sm:$0x1]
    %v152 = vlaneseq
    %v153 = vshrl.u32 %v152, 7
    %v154 = vsub.s32 0, %v153
    %v155 = vrot.slane %v150, %v154
    %v157 = vmul.f32 %v146, %v155
    %v158 = vmul.f32 %v147, %v155
    %v159 = vmul.f32 %v148, %v155
    %v160 = vmul.f32 %v149, %v155
    %v161 = vld [vmem:[%s5] sm:$0x1]
    %v163 = vlaneseq
    %v164 = vshrl.u32 %v163, 7
    %v165 = vsub.s32 0, %v164
    %v166 = vrot.slane %v161, %v165
    %v168 = vadd.f32 %v157, %v166
    %v169 = vadd.f32 %v158, %v166
    %v170 = vadd.f32 %v159, %v166
    %v171 = vadd.f32 %v160, %v166
    %v172 = vsel %vm89, %v168, 0.0
    %v173 = vsel %vm89, %v169, 0.0
    %v174 = vadd.f32 %v172, %v173
    %v175 = vrot.slane %v174, 4
    %v176 = vadd.f32 %v174, %v175
    %v177 = vrot.slane %v176, 2
    %v178 = vadd.f32 %v176, %v177
    %v179 = vrot.slane %v178, 1
    %v180 = vadd.f32 %v178, %v179
    %v181 = vsel %vm89, %v170, 0.0
    %v182 = vsel %vm89, %v171, 0.0
    %v183 = vadd.f32 %v181, %v182
    %v184 = vrot.slane %v183, 4
    %v185 = vadd.f32 %v183, %v184
    %v186 = vrot.slane %v185, 2
    %v187 = vadd.f32 %v185, %v186
    %v188 = vrot.slane %v187, 1
    %v189 = vadd.f32 %v187, %v188
    %v190 = vrcp.pop 16.0
    %v191 = vmul.f32 %v180, %v190
    %v192 = vmul.f32 %v189, %v190
    %v193 = vld [vmem:[%s7] sm:$0xff]
    %v194 = vld [vmem:[%s7 + $0x8] sm:$0xff]
    %v195 = vld [vmem:[%s7 + $0x10] sm:$0xff]
    %v196 = vld [vmem:[%s7 + $0x18] sm:$0xff]
    %v197 = vld [vmem:[%s7 + $0x20] sm:$0xff]
    %v198 = vld [vmem:[%s7 + $0x28] sm:$0xff]
    %200 = vbcast.lane.b32.xlu0 %v191, 256
    %v201 = vpop.permute.xlu0 %200
    %s203 = sor.u32 256, 8
    %204 = vbcast.lane.b32.xlu0 %v191, %s203
    %v205 = vpop.permute.xlu0 %204
    %s207 = sor.u32 256, 16
    %208 = vbcast.lane.b32.xlu0 %v191, %s207
    %v209 = vpop.permute.xlu0 %208
    %s211 = sor.u32 256, 24
    %212 = vbcast.lane.b32.xlu0 %v191, %s211
    %v213 = vpop.permute.xlu0 %212
    %s215 = sor.u32 256, 32
    %216 = vbcast.lane.b32.xlu0 %v191, %s215
    %v217 = vpop.permute.xlu0 %216
    %s219 = sor.u32 256, 40
    %220 = vbcast.lane.b32.xlu0 %v191, %s219
    %v221 = vpop.permute.xlu0 %220
    %223 = vbcast.lane.b32.xlu0 %v192, 256
    %v224 = vpop.permute.xlu0 %223
    %s226 = sor.u32 256, 8
    %227 = vbcast.lane.b32.xlu0 %v192, %s226
    %v228 = vpop.permute.xlu0 %227
    %s230 = sor.u32 256, 16
    %231 = vbcast.lane.b32.xlu0 %v192, %s230
    %v232 = vpop.permute.xlu0 %231
    %s234 = sor.u32 256, 24
    %235 = vbcast.lane.b32.xlu0 %v192, %s234
    %v236 = vpop.permute.xlu0 %235
    %s238 = sor.u32 256, 32
    %239 = vbcast.lane.b32.xlu0 %v192, %s238
    %v240 = vpop.permute.xlu0 %239
    %s242 = sor.u32 256, 40
    %243 = vbcast.lane.b32.xlu0 %v192, %s242
    %v244 = vpop.permute.xlu0 %243
    %v245 = vmul.f32 %v201, %v193
    %v246 = vmul.f32 %v205, %v194
    %v247 = vmul.f32 %v209, %v195
    %v248 = vmul.f32 %v213, %v196
    %v249 = vmul.f32 %v217, %v197
    %v250 = vmul.f32 %v221, %v198
    %v251 = vmul.f32 %v224, %v193
    %v252 = vmul.f32 %v228, %v194
    %v253 = vmul.f32 %v232, %v195
    %v254 = vmul.f32 %v236, %v196
    %v255 = vmul.f32 %v240, %v197
    %v256 = vmul.f32 %v244, %v198
    %v257 = vsel %vm36, %v245, 0.0
    %v258 = vsel %vm36, %v246, 0.0
    %v259 = vadd.f32 %v257, %v258
    %v260 = vsel %vm36, %v247, 0.0
    %v261 = vadd.f32 %v259, %v260
    %v262 = vsel %vm36, %v248, 0.0
    %v263 = vadd.f32 %v261, %v262
    %v264 = vsel %vm36, %v249, 0.0
    %v265 = vadd.f32 %v263, %v264
    %v266 = vsel %vm36, %v250, 0.0
    %v267 = vadd.f32 %v265, %v266
    %v268 = vrot.slane %v267, 4
    %v269 = vadd.f32 %v267, %v268
    %v270 = vrot.slane %v269, 2
    %v271 = vadd.f32 %v269, %v270
    %v272 = vrot.slane %v271, 1
    %v273 = vadd.f32 %v271, %v272
    %v274 = vsel %vm36, %v251, 0.0
    %v275 = vsel %vm36, %v252, 0.0
    %v276 = vadd.f32 %v274, %v275
    %v277 = vsel %vm36, %v253, 0.0
    %v278 = vadd.f32 %v276, %v277
    %v279 = vsel %vm36, %v254, 0.0
    %v280 = vadd.f32 %v278, %v279
    %v281 = vsel %vm36, %v255, 0.0
    %v282 = vadd.f32 %v280, %v281
    %v283 = vsel %vm36, %v256, 0.0
    %v284 = vadd.f32 %v282, %v283
    %v285 = vrot.slane %v284, 4
    %v286 = vadd.f32 %v284, %v285
    %v287 = vrot.slane %v286, 2
    %v288 = vadd.f32 %v286, %v287
    %v289 = vrot.slane %v288, 1
    %v290 = vadd.f32 %v288, %v289
    %v291 = vld [vmem:[%s8] sm:$0x1]
    %v293 = vlaneseq
    %v294 = vshrl.u32 %v293, 7
    %v295 = vsub.s32 0, %v294
    %v296 = vrot.slane %v291, %v295
    %v298 = vadd.f32 %v273, %v296
    %v299 = vadd.f32 %v290, %v296
    %v300 = vlaneseq
    %v301 = vshrl.u32 %v300, 7
    %v302 = vsub.s32 0, %v301
    %v303 = vrot.slane %v298, %v302
    %v304 = vlaneseq
    %v305 = vshrl.u32 %v304, 7
    %v306 = vsub.s32 0, %v305
    %v307 = vrot.slane %v299, %v306
    %v308 = vpack.c.bf16 %v84, %v83
    %v309 = vld [vmem:[%s6] sm:$0xff]
    %v310 = vld [vmem:[%s6 + $0x8] sm:$0xff]
    %v311 = vld [vmem:[%s6 + $0x10] sm:$0xff]
    %v312 = vld [vmem:[%s6 + $0x18] sm:$0xff]
    %v313 = vpack.c.bf16 %v310, %v309
    %v314 = vpack.c.bf16 %v312, %v311
    %v316 = vsel %vm36, %v308, 0
    %318 = vmatprep.subr.bf16.mxu0 0
    %319 = vmatpush1.bf16.msra.mxu0 %v313
    %320 = vmatprep.subr.bf16.mxu0 0
    %321 = vmatpush1.bf16.msra.mxu0 %v314
    %322 = vmatprep.subr.bf16.mxu0 0
    %323 = vmatpush1.bf16.msra.mxu0 0
    %324 = vmatprep.subr.bf16.mxu0 0
    %325 = vmatpush1.bf16.msra.mxu0 0
    %326 = vmatprep.subr.bf16.mxu0 0
    %327 = vmatpush1.bf16.msra.mxu0 0
    %328 = vmatprep.subr.bf16.mxu0 0
    %329 = vmatpush1.bf16.msra.mxu0 0
    %330 = vmatprep.subr.bf16.mxu0 0
    %331 = vmatpush1.bf16.msra.mxu0 0
    %332 = vmatprep.subr.bf16.mxu0 0
    %333 = vmatpush1.bf16.msra.mxu0 0
    %334 = vmatprep.subr.bf16.mxu0 0
    %335 = vmatpush1.bf16.msra.mxu0 0
    %336 = vmatprep.subr.bf16.mxu0 0
    %337 = vmatpush1.bf16.msra.mxu0 0
    %338 = vmatprep.subr.bf16.mxu0 0
    %339 = vmatpush1.bf16.msra.mxu0 0
    %340 = vmatprep.subr.bf16.mxu0 0
    %341 = vmatpush1.bf16.msra.mxu0 0
    %342 = vmatprep.subr.bf16.mxu0 0
    %343 = vmatpush1.bf16.msra.mxu0 0
    %344 = vmatprep.subr.bf16.mxu0 0
    %345 = vmatpush1.bf16.msra.mxu0 0
    %346 = vmatprep.subr.bf16.mxu0 0
    %347 = vmatpush1.bf16.msra.mxu0 0
    %348 = vmatprep.subr.bf16.mxu0 0
    %349 = vmatpush1.bf16.msra.mxu0 0
    %350 = vmatprep.mubr.bf16.mxu0 0
    %351 = vmatmul.mubr.bf16.gmra.mrb[0].mxu0 %v316
    %v352 = vpop.f32.mrb[0].mxu0
    %v353 = vadd.f32 %v303, %v352
    %v354 = vpop.f32.mrb[0].mxu0
    %v355 = vpop.f32.mrb[0].mxu0
    %v356 = vadd.f32 %v307, %v355
    %v357 = vpop.f32.mrb[0].mxu0
    %358 = vdwg.mxu0
    %359 = vst.msk [vmem:[#allocation2] sm:$0xff] %vm36, %v353
    %360 = vst.msk [vmem:[#allocation2 + $0x8] sm:$0xff] %vm36, %v356
    // Predicated region
    $region38: #{tpu_custom_call.1} parent=1 // pred_check
      _
    $region39: #{tpu_custom_call.1} parent=1 // pred_check_branch
      %362 = sbr.rel (0) target = $region41
    $region40: #{tpu_custom_call.1} parent=1 // pred_region
      %s364 = ssub.s32 256, 256
      %365 = vsyncadd [#allocation3], %s364
      %s366 = sshll.u32 [#allocation2], 4
      %s367 = int_to_ptr.vmem [resolvable:$true] %s366
      %372 = dma.vmem_to_hbm [thread:$0]  %s367, 256, %s9, [#allocation3], 128, 128, 8
    $region41: #{tpu_custom_call.1} parent=1 // pred_fallthru
      _
    // Predicated region
    $region42: #{tpu_custom_call.1} parent=1 // pred_check
      _
    $region43: #{tpu_custom_call.1} parent=1 // pred_check_branch
      %374 = sbr.rel (0) target = $region45
    $region44: #{tpu_custom_call.1} parent=1 // pred_region
      %375 = dma.done [#allocation3], 256
    $region45: #{tpu_custom_call.1} parent=1 // pred_fallthru
      _
    %376 = vsyncpa [#allocation3], 1

</llo_original>
